<compile_context>
chip_gen: v7x
topology: tpu7x:2x2x1
jax: 0.10.0
libtpu: 0.0.40
codegen_flags: <defaults>
</compile_context>

<pallas_src>
import numpy as np

import jax
import jax.numpy as jnp
from jax.experimental import pallas as pl
from jax.experimental.pallas import tpu as pltpu


# ---------------------------------------------------------------------------
# Pallas kernels (one fused pallas_call per forward step, grid over channels)
# ---------------------------------------------------------------------------

def _mix_clamp(wdec_ref, beff_ref, lat_ref, uh_ref, uwt_ref, c):
    """Stand-in decode for output channel c: channel mix (SMEM scalars, VPU)
    -> 8x nearest upsample (exact 0/1 selector matmuls, f32)
    -> folded affine + clamp.  Returns the clamped [H, W] plane in bf16."""
    cin = lat_ref.shape[0]
    m = lat_ref[0] * wdec_ref[0, c]
    for k in range(1, cin):                       # static unroll over 4 latent channels
        m = m + lat_ref[k] * wdec_ref[k, c]       # [Hl, Wl] f32
    t = jnp.dot(uh_ref[...], m, preferred_element_type=jnp.float32)    # [H, Wl]
    x = jnp.dot(t, uwt_ref[...], preferred_element_type=jnp.float32)   # [H, W]
    # affine already folded into wdec/beff -> only clip(x + bias, 0, 1)
    return jnp.clip(x + beff_ref[c], 0.0, 1.0).astype(jnp.bfloat16)


def _single_kernel(wdec_ref, beff_ref, lat_ref, uh_ref, uwt_ref,
                   ah_ref, awt_ref, o_ref):
    # o[c] = Ah @ clamp(decode(lat)_c) @ Aw^T      (per-channel separable resize)
    c = pl.program_id(0)
    y = _mix_clamp(wdec_ref, beff_ref, lat_ref, uh_ref, uwt_ref, c)     # [H, W] bf16
    t = jnp.dot(ah_ref[...], y, preferred_element_type=jnp.float32)     # [H, W] f32
    o_ref[...] = jnp.dot(t.astype(jnp.bfloat16), awt_ref[...],
                         preferred_element_type=jnp.float32)


def _blend_kernel(wdec_ref, beff_ref, alpha_ref, lat_ref, uh_ref, uwt_ref,
                  ahs_ref, aw1t_ref, aw2t_ref, o_ref):
    # Two coarse-to-fine branches blended with alpha (SMEM scalar).  The two H
    # operators are stacked into one [2H, H] matrix -> single MXU push.
    c = pl.program_id(0)
    y = _mix_clamp(wdec_ref, beff_ref, lat_ref, uh_ref, uwt_ref, c)     # [H, W] bf16
    ts = jnp.dot(ahs_ref[...], y, preferred_element_type=jnp.float32)   # [2H, W] f32
    h = ts.shape[0] // 2
    y1 = jnp.dot(ts[:h].astype(jnp.bfloat16), aw1t_ref[...],
                 preferred_element_type=jnp.float32)                    # [H, W]
    y2 = jnp.dot(ts[h:].astype(jnp.bfloat16), aw2t_ref[...],
                 preferred_element_type=jnp.float32)                    # [H, W]
    a = alpha_ref[0]
    o_ref[...] = y1 + (y2 - y1) * a                                     # (1-a)*y1 + a*y2


def _smem_spec():
    return pl.BlockSpec(memory_space=pltpu.MemorySpace.SMEM)


def _full_vmem_spec(shape):
    nd = len(shape)
    return pl.BlockSpec(shape, lambda c, _nd=nd: (0,) * _nd)


def _single_call(wdec, beff, lat, uh, uwt, ah, awt):
    cout = beff.shape[0]
    H = ah.shape[0]
    W = awt.shape[1]
    return pl.pallas_call(
        _single_kernel,
        out_shape=jax.ShapeDtypeStruct((cout, H, W), jnp.float32),
        grid=(cout,),
        in_specs=[_smem_spec(), _smem_spec(),
                  _full_vmem_spec(lat.shape), _full_vmem_spec(uh.shape),
                  _full_vmem_spec(uwt.shape), _full_vmem_spec(ah.shape),
                  _full_vmem_spec(awt.shape)],
        out_specs=pl.BlockSpec((None, H, W), lambda c: (c, 0, 0)),
        compiler_params=pltpu.CompilerParams(dimension_semantics=("parallel",)),
    )(wdec, beff, lat, uh, uwt, ah, awt)


def _blend_call(wdec, beff, alpha, lat, uh, uwt, ahs, aw1t, aw2t):
    cout = beff.shape[0]
    H = ahs.shape[0] // 2
    W = aw1t.shape[1]
    return pl.pallas_call(
        _blend_kernel,
        out_shape=jax.ShapeDtypeStruct((cout, H, W), jnp.float32),
        grid=(cout,),
        in_specs=[_smem_spec(), _smem_spec(), _smem_spec(),
                  _full_vmem_spec(lat.shape), _full_vmem_spec(uh.shape),
                  _full_vmem_spec(uwt.shape), _full_vmem_spec(ahs.shape),
                  _full_vmem_spec(aw1t.shape), _full_vmem_spec(aw2t.shape)],
        out_specs=pl.BlockSpec((None, H, W), lambda c: (c, 0, 0)),
        compiler_params=pltpu.CompilerParams(dimension_semantics=("parallel",)),
    )(wdec, beff, alpha, lat, uh, uwt, ahs, aw1t, aw2t)


# ---------------------------------------------------------------------------
# Resize weight matrices (host-built once, composed per branch)
# ---------------------------------------------------------------------------

def bilinear_matrix(out_size, in_size):
    """F.interpolate(mode='bilinear', align_corners=False, antialias=False) weights."""
    scale = in_size / out_size
    i = np.arange(out_size)
    x = (i + 0.5) * scale - 0.5
    x = np.clip(x, 0.0, in_size - 1)
    x0 = np.clip(np.floor(x).astype(np.int64), 0, in_size - 1)
    x1 = np.minimum(x0 + 1, in_size - 1)
    w1 = (x - x0).astype(np.float32)
    w0 = 1.0 - w1
    R = np.zeros((out_size, in_size), dtype=np.float32)
    R[i, x0] += w0
    R[i, x1] += w1
    return R


def nearest_matrix(out_size, in_size):
    """F.interpolate(mode='nearest') selection weights (0/1, exact in any dtype)."""
    idx = (np.arange(out_size) * in_size) // out_size
    R = np.zeros((out_size, in_size), dtype=np.float32)
    R[np.arange(out_size), idx] = 1.0
    return R


def _compose_chain(mats):
    """mats listed in application order (first applied first); result acts on the left."""
    out = mats[0]
    for m in mats[1:]:
        out = m @ out
    return out


# ---------------------------------------------------------------------------
# LatentDrawer (forward pass only) in JAX + Pallas
# ---------------------------------------------------------------------------

class LatentDrawerPallas:
    def __init__(self, width=64, height=64, num_rows=4, num_cols=4, plan="fast",
                 key=None):
        self.h = height
        self.w = width
        self.use_c2f = True
        # module hardcodes (30, 30, 3); same formula, smaller (num_rows, num_cols)
        # so the demo shapes stay tiny.
        self.num_rows, self.num_cols, self.num_step = (num_rows, num_cols, 3)
        fac = 2 ** self.num_step
        if plan in ["easy"]:
            self.plan = [25, 50, 100]
        elif plan in ["fast"]:
            self.plan = [100, 200, 400]
        else:
            self.plan = [400, 800, 1600]

        key = jax.random.PRNGKey(0) if key is None else key
        k_lat, k_w = jax.random.split(key)
        # latent = torch.randn([1, 4, h//8, w//8])
        self.latent = jax.random.normal(
            k_lat, (1, 4, self.h // 8, self.w // 8), jnp.float32)

        # Deterministic stand-in "decoder" parameters (4 -> 3 channels).
        self.cin, self.cout = 4, 3
        w_dec = np.asarray(0.5 * jax.random.normal(k_w, (self.cin, self.cout), jnp.float32))
        b_dec = np.zeros((self.cout,), np.float32)
        self.w_dec = jnp.asarray(w_dec)           # unscaled, for the uncomposed reference
        self.b_dec = jnp.asarray(b_dec)

        # Fold the "(x + 1) / 2" affine of render() into the decoder weights/bias:
        # kernel does only clip(x + bias, 0, 1).
        self.w_eff = jnp.asarray(w_dec * 0.5)             # [Cin, Cout]  (SMEM scalars)
        self.b_eff = jnp.asarray((b_dec + 1.0) * 0.5)     # [Cout]       (SMEM scalars)

        n = 3
        s_rows = self.num_rows * fac // 2 ** (n - 1)
        s_cols = self.num_cols * fac // 2 ** (n - 1)
        self.down_sizes = [(s_rows * 2 ** i, s_cols * 2 ** i) for i in range(n)]

        H, W = self.h, self.w
        Hl, Wl = H // 8, W // 8
        self.Hl, self.Wl = Hl, Wl

        # Decode-stage 8x nearest upsample selectors (kept f32: exact clamp input).
        self.uh = jnp.asarray(nearest_matrix(H, Hl))            # [H, Hl]
        self.uwt = jnp.asarray(np.ascontiguousarray(nearest_matrix(W, Wl).T))  # [Wl, W]

        # ---- post-clamp composed per-channel resize operators (bf16, no block-diag) --
        d_h = [s[0] for s in self.down_sizes]
        d_w = [s[1] for s in self.down_sizes]
        B, N = bilinear_matrix, nearest_matrix

        def op(h_chain, w_chain):
            ah = _compose_chain(h_chain)                         # [H, H]
            awt = np.ascontiguousarray(_compose_chain(w_chain).T)  # [W, W]
            return (jnp.asarray(ah, dtype=jnp.bfloat16),
                    jnp.asarray(awt, dtype=jnp.bfloat16))

        def blend_op(h1, w1, h2, w2):
            ah1 = _compose_chain(h1)
            ah2 = _compose_chain(h2)
            ahs = np.concatenate([ah1, ah2], axis=0)             # [2H, H] stacked
            aw1t = np.ascontiguousarray(_compose_chain(w1).T)    # [W, W]
            aw2t = np.ascontiguousarray(_compose_chain(w2).T)    # [W, W]
            return (jnp.asarray(ahs, dtype=jnp.bfloat16),
                    jnp.asarray(aw1t, dtype=jnp.bfloat16),
                    jnp.asarray(aw2t, dtype=jnp.bfloat16))

        # branch 0: down0 -> upshape
        self.branch0 = op([B(d_h[0], H), N(H, d_h[0])],
                          [B(d_w[0], W), N(W, d_w[0])])
        # branch 1: blend( down1(down0(img)), down1(img) ) -> upshape
        self.branch1 = blend_op(
            [B(d_h[0], H), B(d_h[1], d_h[0]), N(H, d_h[1])],
            [B(d_w[0], W), B(d_w[1], d_w[0]), N(W, d_w[1])],
            [B(d_h[1], H), N(H, d_h[1])],
            [B(d_w[1], W), N(W, d_w[1])])
        # branch 2: blend( down2(down1(img)), down2(img) ) -> upshape
        self.branch2 = blend_op(
            [B(d_h[1], H), B(d_h[2], d_h[1]), N(H, d_h[2])],
            [B(d_w[1], W), B(d_w[2], d_w[1]), N(W, d_w[2])],
            [B(d_h[2], H), N(H, d_h[2])],
            [B(d_w[2], W), N(W, d_w[2])])
        # branch 3: down2 -> upshape
        self.branch3 = op([B(d_h[2], H), N(H, d_h[2])],
                          [B(d_w[2], W), N(W, d_w[2])])
        # use_c2f == False / render(): upshape only (identity at H x W)
        self.branch_plain = op([N(H, H)], [N(W, W)])

        # Blend-stage plan bounds as device-resident constants; alpha is computed
        # on device inside the jitted wrapper from the int32 iteration scalar.
        self.bounds1 = jnp.asarray([self.plan[0], self.plan[1]], jnp.float32)
        self.bounds2 = jnp.asarray([self.plan[1], self.plan[2]], jnp.float32)

        # ---- jitted entry points (constant shapes -> one compile each) -------------
        def single_fn(lat, wdec, beff, uh, uwt, ah, awt):
            # kernel writes NCHW channel planes directly; only add the batch dim.
            return _single_call(wdec, beff, lat[0], uh, uwt, ah, awt)[None]

        def blend_fn(lat, wdec, beff, uh, uwt, ahs, aw1t, aw2t, bounds, it):
            itf = jnp.asarray(it, jnp.float32)
            alpha = jnp.reshape((itf - bounds[0]) / (bounds[1] - bounds[0]), (1,))
            return _blend_call(wdec, beff, alpha, lat[0], uh, uwt,
                               ahs, aw1t, aw2t)[None]

        self._fwd_single = jax.jit(single_fn)
        self._fwd_blend = jax.jit(blend_fn)

        self.cur_iteration = 0
        self.img = self.render()

    # -- model --------------------------------------------------------------
    def render(self):
        return self._fwd_single(self.latent, self.w_eff, self.b_eff,
                                self.uh, self.uwt, *self.branch_plain)

    def synth(self, cur_iteration):
        lat = self.latent
        common = (self.w_eff, self.b_eff, self.uh, self.uwt)
        if self.use_c2f:
            if cur_iteration < self.plan[0]:
                img = self._fwd_single(lat, *common, *self.branch0)
            elif cur_iteration < self.plan[1]:
                img = self._fwd_blend(lat, *common, *self.branch1,
                                      self.bounds1, np.int32(cur_iteration))
            elif cur_iteration < self.plan[2]:
                img = self._fwd_blend(lat, *common, *self.branch2,
                                      self.bounds2, np.int32(cur_iteration))
            else:
                img = self._fwd_single(lat, *common, *self.branch3)
        else:
            img = self._fwd_single(lat, *common, *self.branch_plain)
        self.img = img
        return img

    def forward(self):
        self.cur_iteration += 1
        return self.synth(self.cur_iteration)


# ---------------------------------------------------------------------------
# Pure-JAX uncomposed f32 reference (verification only, no Pallas)
# ---------------------------------------------------------------------------

def _reference_forward(drawer, cur_iteration):
    h, w = drawer.h, drawer.w

    def resize(img, rh, rw):  # img [C, H, W]
        return jnp.einsum('oh,chw,pw->cop', jnp.asarray(rh), img, jnp.asarray(rw))

    def down(img, size_hw):
        _, H, W = img.shape
        return resize(img, bilinear_matrix(size_hw[0], H), bilinear_matrix(size_hw[1], W))

    def upshape(img):
        _, H, W = img.shape
        return resize(img, nearest_matrix(h, H), nearest_matrix(w, W))

    lat = drawer.latent[0]                                        # [Cin, Hl, Wl]
    mixed = jnp.einsum('khw,kc->chw', lat, drawer.w_dec) + drawer.b_dec[:, None, None]
    img = resize(mixed, nearest_matrix(h, lat.shape[1]), nearest_matrix(w, lat.shape[2]))
    img = jnp.clip((img + 1.0) * 0.5, 0.0, 1.0)

    plan, ds = drawer.plan, drawer.down_sizes
    if cur_iteration < plan[0]:
        img = down(img, ds[0])
    elif cur_iteration < plan[1]:
        a1 = down(down(img, ds[0]), ds[1])
        a2 = down(img, ds[1])
        alpha = (cur_iteration - plan[0]) / (plan[1] - plan[0])
        img = a1 * (1 - alpha) + a2 * alpha
    elif cur_iteration < plan[2]:
        a1 = down(down(img, ds[1]), ds[2])
        a2 = down(img, ds[2])
        alpha = (cur_iteration - plan[1]) / (plan[2] - plan[1])
        img = a1 * (1 - alpha) + a2 * alpha
    else:
        img = down(img, ds[2])
    return upshape(img)[None]


# ---------------------------------------------------------------------------

if __name__ == "__main__":
    key = jax.random.PRNGKey(0)
    drawer = LatentDrawerPallas(width=64, height=64, num_rows=4, num_cols=4,
                                plan="fast", key=key)

    # bf16 resize weights -> widened tolerance vs. the f32 reference.
    ATOL, RTOL = 3e-2, 1e-2

    # Branch 0: cur_iteration = 1 < plan[0] -> single composed resize.
    out1 = jax.block_until_ready(drawer.forward())
    assert out1.shape == (1, 3, 64, 64), out1.shape
    assert float(jnp.min(out1)) >= -2e-2 and float(jnp.max(out1)) <= 1.0 + 2e-2
    ref1 = jax.block_until_ready(_reference_forward(drawer, 1))
    np.testing.assert_allclose(np.asarray(out1), np.asarray(ref1), atol=ATOL, rtol=RTOL)

    # Branch 1: cur_iteration = 150 -> blended coarse-to-fine path (alpha on device).
    drawer.cur_iteration = 149
    out2 = jax.block_until_ready(drawer.forward())
    assert out2.shape == (1, 3, 64, 64), out2.shape
    ref2 = jax.block_until_ready(_reference_forward(drawer, 150))
    np.testing.assert_allclose(np.asarray(out2), np.asarray(ref2), atol=ATOL, rtol=RTOL)

    # Branch 2 (different alpha, same compiled blend kernel) and final branch.
    drawer.cur_iteration = 299
    out3 = jax.block_until_ready(drawer.forward())
    ref3 = jax.block_until_ready(_reference_forward(drawer, 300))
    np.testing.assert_allclose(np.asarray(out3), np.asarray(ref3), atol=ATOL, rtol=RTOL)

    drawer.cur_iteration = 999
    out4 = jax.block_until_ready(drawer.forward())
    ref4 = jax.block_until_ready(_reference_forward(drawer, 1000))
    np.testing.assert_allclose(np.asarray(out4), np.asarray(ref4), atol=ATOL, rtol=RTOL)

    print("KERNEL_OK")
</pallas_src>

<mosaic_0001>
module attributes {stable_mosaic.version = 11 : i64} {
  func.func @_single_kernel(%arg0: i32, %arg1: memref<4x3xf32, #tpu.memory_space<smem>>, %arg2: memref<3xf32, #tpu.memory_space<smem>>, %arg3: memref<4x8x8xf32, #tpu.memory_space<vmem>>, %arg4: memref<64x8xf32, #tpu.memory_space<vmem>>, %arg5: memref<8x64xf32, #tpu.memory_space<vmem>>, %arg6: memref<64x64xbf16, #tpu.memory_space<vmem>>, %arg7: memref<64x64xbf16, #tpu.memory_space<vmem>>, %arg8: memref<1x64x64xf32, #tpu.memory_space<vmem>>) attributes {dimension_semantics = [#tpu.dimension_semantics<parallel>], iteration_bounds = array<i64: 3>, scalar_prefetch = 0 : i64, scratch_operands = 0 : i64, tpu.core_type = #tpu.core_type<tc>, window_params = [{transform_indices = @transform_0, window_bounds = array<i64: 4, 3>}, {transform_indices = @transform_1, window_bounds = array<i64: 3>}, {pipeline_mode = #tpu.pipeline_mode<synchronous>, transform_indices = @transform_2, window_bounds = array<i64: 4, 8, 8>}, {pipeline_mode = #tpu.pipeline_mode<synchronous>, transform_indices = @transform_3, window_bounds = array<i64: 64, 8>}, {pipeline_mode = #tpu.pipeline_mode<synchronous>, transform_indices = @transform_4, window_bounds = array<i64: 8, 64>}, {pipeline_mode = #tpu.pipeline_mode<synchronous>, transform_indices = @transform_5, window_bounds = array<i64: 64, 64>}, {pipeline_mode = #tpu.pipeline_mode<synchronous>, transform_indices = @transform_6, window_bounds = array<i64: 64, 64>}, {transform_indices = @transform_7, window_bounds = array<i64: 1, 64, 64>}]} {
    %c0 = arith.constant 0 : index
    %c0_0 = arith.constant 0 : index
    %c0_1 = arith.constant 0 : index
    %0 = vector.load %arg3[%c0, %c0_0, %c0_1] : memref<4x8x8xf32, #tpu.memory_space<vmem>>, vector<1x8x8xf32>
    %1 = vector.shape_cast %0 : vector<1x8x8xf32> to vector<8x8xf32>
    %c0_2 = arith.constant 0 : index
    %2 = arith.index_cast %arg0 : i32 to index
    %3 = memref.load %arg1[%c0_2, %2] : memref<4x3xf32, #tpu.memory_space<smem>>
    %4 = vector.broadcast %3 : f32 to vector<8x8xf32>
    %5 = arith.mulf %1, %4 : vector<8x8xf32>
    %c1 = arith.constant 1 : index
    %c0_3 = arith.constant 0 : index
    %c0_4 = arith.constant 0 : index
    %6 = vector.load %arg3[%c1, %c0_3, %c0_4] : memref<4x8x8xf32, #tpu.memory_space<vmem>>, vector<1x8x8xf32>
    %7 = vector.shape_cast %6 : vector<1x8x8xf32> to vector<8x8xf32>
    %c1_5 = arith.constant 1 : index
    %8 = arith.index_cast %arg0 : i32 to index
    %9 = memref.load %arg1[%c1_5, %8] : memref<4x3xf32, #tpu.memory_space<smem>>
    %10 = vector.broadcast %9 : f32 to vector<8x8xf32>
    %11 = arith.mulf %7, %10 : vector<8x8xf32>
    %12 = arith.addf %5, %11 : vector<8x8xf32>
    %c2 = arith.constant 2 : index
    %c0_6 = arith.constant 0 : index
    %c0_7 = arith.constant 0 : index
    %13 = vector.load %arg3[%c2, %c0_6, %c0_7] : memref<4x8x8xf32, #tpu.memory_space<vmem>>, vector<1x8x8xf32>
    %14 = vector.shape_cast %13 : vector<1x8x8xf32> to vector<8x8xf32>
    %c2_8 = arith.constant 2 : index
    %15 = arith.index_cast %arg0 : i32 to index
    %16 = memref.load %arg1[%c2_8, %15] : memref<4x3xf32, #tpu.memory_space<smem>>
    %17 = vector.broadcast %16 : f32 to vector<8x8xf32>
    %18 = arith.mulf %14, %17 : vector<8x8xf32>
    %19 = arith.addf %12, %18 : vector<8x8xf32>
    %c3 = arith.constant 3 : index
    %c0_9 = arith.constant 0 : index
    %c0_10 = arith.constant 0 : index
    %20 = vector.load %arg3[%c3, %c0_9, %c0_10] : memref<4x8x8xf32, #tpu.memory_space<vmem>>, vector<1x8x8xf32>
    %21 = vector.shape_cast %20 : vector<1x8x8xf32> to vector<8x8xf32>
    %c3_11 = arith.constant 3 : index
    %22 = arith.index_cast %arg0 : i32 to index
    %23 = memref.load %arg1[%c3_11, %22] : memref<4x3xf32, #tpu.memory_space<smem>>
    %24 = vector.broadcast %23 : f32 to vector<8x8xf32>
    %25 = arith.mulf %21, %24 : vector<8x8xf32>
    %26 = arith.addf %19, %25 : vector<8x8xf32>
    %c0_12 = arith.constant 0 : index
    %c0_13 = arith.constant 0 : index
    %27 = vector.load %arg4[%c0_12, %c0_13] : memref<64x8xf32, #tpu.memory_space<vmem>>, vector<64x8xf32>
    %cst = arith.constant dense<0.000000e+00> : vector<64x8xf32>
    %28 = tpu.matmul %27, %26, %cst {dimension_numbers = #tpu.dot_dimension_numbers<[1], [0], [0], [1], [0, 0, 1, 1], [], []>} : vector<64x8xf32>, vector<8x8xf32>, vector<64x8xf32> -> vector<64x8xf32>
    %c0_14 = arith.constant 0 : index
    %c0_15 = arith.constant 0 : index
    %29 = vector.load %arg5[%c0_14, %c0_15] : memref<8x64xf32, #tpu.memory_space<vmem>>, vector<8x64xf32>
    %cst_16 = arith.constant dense<0.000000e+00> : vector<64x64xf32>
    %30 = tpu.matmul %28, %29, %cst_16 {dimension_numbers = #tpu.dot_dimension_numbers<[1], [0], [0], [1], [0, 0, 1, 1], [], []>} : vector<64x8xf32>, vector<8x64xf32>, vector<64x64xf32> -> vector<64x64xf32>
    %31 = arith.index_cast %arg0 : i32 to index
    %32 = memref.load %arg2[%31] : memref<3xf32, #tpu.memory_space<smem>>
    %33 = vector.broadcast %32 : f32 to vector<64x64xf32>
    %34 = arith.addf %30, %33 : vector<64x64xf32>
    %cst_17 = arith.constant 0.000000e+00 : f32
    %cst_18 = arith.constant 1.000000e+00 : f32
    %35 = vector.broadcast %cst_17 : f32 to vector<64x64xf32>
    %36 = arith.maximumf %35, %34 : vector<64x64xf32>
    %37 = vector.broadcast %cst_18 : f32 to vector<64x64xf32>
    %38 = arith.minimumf %37, %36 : vector<64x64xf32>
    %39 = arith.truncf %38 : vector<64x64xf32> to vector<64x64xbf16>
    %c0_19 = arith.constant 0 : index
    %c0_20 = arith.constant 0 : index
    %40 = vector.load %arg6[%c0_19, %c0_20] : memref<64x64xbf16, #tpu.memory_space<vmem>>, vector<64x64xbf16>
    %cst_21 = arith.constant dense<0.000000e+00> : vector<64x64xf32>
    %41 = tpu.matmul %40, %39, %cst_21 {dimension_numbers = #tpu.dot_dimension_numbers<[1], [0], [0], [1], [0, 0, 1, 1], [], []>} : vector<64x64xbf16>, vector<64x64xbf16>, vector<64x64xf32> -> vector<64x64xf32>
    %42 = arith.truncf %41 : vector<64x64xf32> to vector<64x64xbf16>
    %c0_22 = arith.constant 0 : index
    %c0_23 = arith.constant 0 : index
    %43 = vector.load %arg7[%c0_22, %c0_23] : memref<64x64xbf16, #tpu.memory_space<vmem>>, vector<64x64xbf16>
    %cst_24 = arith.constant dense<0.000000e+00> : vector<64x64xf32>
    %44 = tpu.matmul %42, %43, %cst_24 {dimension_numbers = #tpu.dot_dimension_numbers<[1], [0], [0], [1], [0, 0, 1, 1], [], []>} : vector<64x64xbf16>, vector<64x64xbf16>, vector<64x64xf32> -> vector<64x64xf32>
    %c0_25 = arith.constant 0 : index
    %c0_26 = arith.constant 0 : index
    %c0_27 = arith.constant 0 : index
    %45 = vector.load %arg8[%c0_25, %c0_26, %c0_27] : memref<1x64x64xf32, #tpu.memory_space<vmem>>, vector<1x64x64xf32>
    %46 = vector.shape_cast %45 : vector<1x64x64xf32> to vector<64x64xf32>
    %47 = vector.shape_cast %44 : vector<64x64xf32> to vector<1x64x64xf32>
    tpu.vector_store %arg8[%c0_25, %c0_26, %c0_27], %47 {strides = array<i32>} : memref<1x64x64xf32, #tpu.memory_space<vmem>>, vector<1x64x64xf32>,
    return
  }
  func.func @transform_0(%arg0: i32) -> (i32, i32) {
    %c0_i32 = arith.constant 0 : i32
    %c0_i32_0 = arith.constant 0 : i32
    %c0_i32_1 = arith.constant 0 : i32
    return %c0_i32, %c0_i32_0 : i32, i32
  }
  func.func @transform_1(%arg0: i32) -> i32 {
    %c0_i32 = arith.constant 0 : i32
    %c0_i32_0 = arith.constant 0 : i32
    return %c0_i32 : i32
  }
  func.func @transform_2(%arg0: i32) -> (i32, i32, i32) {
    %c0_i32 = arith.constant 0 : i32
    %c0_i32_0 = arith.constant 0 : i32
    %c0_i32_1 = arith.constant 0 : i32
    %c0_i32_2 = arith.constant 0 : i32
    return %c0_i32, %c0_i32_0, %c0_i32_1 : i32, i32, i32
  }
  func.func @transform_3(%arg0: i32) -> (i32, i32) {
    %c0_i32 = arith.constant 0 : i32
    %c0_i32_0 = arith.constant 0 : i32
    %c0_i32_1 = arith.constant 0 : i32
    return %c0_i32, %c0_i32_0 : i32, i32
  }
  func.func @transform_4(%arg0: i32) -> (i32, i32) {
    %c0_i32 = arith.constant 0 : i32
    %c0_i32_0 = arith.constant 0 : i32
    %c0_i32_1 = arith.constant 0 : i32
    return %c0_i32, %c0_i32_0 : i32, i32
  }
  func.func @transform_5(%arg0: i32) -> (i32, i32) {
    %c0_i32 = arith.constant 0 : i32
    %c0_i32_0 = arith.constant 0 : i32
    %c0_i32_1 = arith.constant 0 : i32
    return %c0_i32, %c0_i32_0 : i32, i32
  }
  func.func @transform_6(%arg0: i32) -> (i32, i32) {
    %c0_i32 = arith.constant 0 : i32
    %c0_i32_0 = arith.constant 0 : i32
    %c0_i32_1 = arith.constant 0 : i32
    return %c0_i32, %c0_i32_0 : i32, i32
  }
  func.func @transform_7(%arg0: i32) -> (i32, i32, i32) {
    %c0_i32 = arith.constant 0 : i32
    %c0_i32_0 = arith.constant 0 : i32
    %c0_i32_1 = arith.constant 0 : i32
    return %arg0, %c0_i32, %c0_i32_0 : i32, i32, i32
  }
}

</mosaic_0001>

<llo_original>
// kernel: single_fn.1
$region0: #{single_fn.1}
  #allocation0 [shape = 'u32[]', space=smem, size = 0x4, offset = 0x4, fixed_abs, tag = 'smem constant byte address 0x4 - core index']
  #allocation1 [shape = 'u32[144,128]{1,0:T(1,128)}', space=vmem, size = 0x12000, scoped, tag = 'internal scratch']
  %s0 = inlined_call_operand.hbm [shape: f32[4,3], index: 0, kind: input, shape index: {}]
  %s1 = inlined_call_operand.vmem [shape: f32[3], index: 1, kind: input, shape index: {}]
  %s2 = inlined_call_operand.vmem [shape: f32[4,8,8], index: 2, kind: input, shape index: {}]
  %s3 = inlined_call_operand.vmem [shape: f32[64,8], index: 3, kind: input, shape index: {}]
  %s4 = inlined_call_operand.hbm [shape: f32[8,64], index: 4, kind: input, shape index: {}]
  %s5 = inlined_call_operand.vmem [shape: bf16[64,64], index: 5, kind: input, shape index: {}]
  %s6 = inlined_call_operand.vmem [shape: bf16[64,64], index: 6, kind: input, shape index: {}]
  %s7 = inlined_call_operand.hbm [shape: f32[3,64,64], index: 7, kind: output, shape index: {}]
  %s8 = sld [smem:[#allocation0]]
  $region73: #{single_fn.1} parent=0
    _
  %s10 = ssub.s32 1, %s8
  %s11 = scalar_select 0, %s10, %s8
  $region1: #{single_fn.1} parent=0
    #allocation2 [shape = 'u8[2048]{0}', space=smem, size = 0x800, scoped, tag = 'input window, operand 0, single buffered']
    #allocation3 [shape = 's32[2]{0}', space=sflag, size = 0x8, scoped, tag = 'scoped memory for single_fn.1']
    #allocation4 [shape = 's32[2]{0}', space=sflag, size = 0x8, scoped, tag = 'scoped memory for single_fn.1']
    #allocation5 [shape = 's32[2]{0}', space=sflag, size = 0x8, scoped, tag = 'scoped memory for single_fn.1']
    #allocation6 [shape = 's32[2]{0}', space=sflag, size = 0x8, scoped, tag = 'scoped memory for single_fn.1']
    #allocation7 [shape = 'u8[512]{0}', space=smem, size = 0x200, scoped, tag = 'input window, operand 1, single buffered']
    #allocation8 [shape = 'u8[4096]{0}', space=vmem, size = 0x1000, scoped, tag = 'input window, operand 4, single buffered']
    #allocation9 [shape = 'u8[65536]{0}', space=vmem, size = 0x10000, scoped, tag = 'output window, operand 0']
    %12 = vsyncpa [#allocation5], 0
    %13 = vsyncpa [#allocation6], 0
    %14 = vsyncpa [#allocation3], 0
    %15 = vsyncpa [#allocation4], 0
    %s16 = scalar_lea.sflag [#allocation4], 1
    %17 = vsyncpa %s16, 0
    loop: start=0, step=1, limit=5
    $region2: #{single_fn.1} parent=1 // loop_pre_header
      _
    $region3: #{single_fn.1} parent=1 // loop_header
      %s19 = sphi 0, %s23
      %p20 = scmp.ge.s32.totalorder %s19, 5
      %s27 = sphi 0, %s27
      %s29 = sphi 0, %s27
      %s30 = sphi 0, %s29
      %s44 = sphi 0, %s30
      %s48 = sphi 0, %s48
      %s50 = sphi 0, %s48
      %s51 = sphi 0, %s50
      %s65 = sphi 0, %s51
      %s69 = sphi 0, %s69
      %s71 = sphi 0, %s69
      %s72 = sphi 0, %s71
      %s86 = sphi 0, %s72
      %s90 = sphi 0, %s90
      %s92 = sphi 0, %s90
      %s93 = sphi 0, %s92
      %s107 = sphi 0, %s93
      %s111 = sphi 0, %s111
      %s113 = sphi 0, %s111
      %s114 = sphi 0, %s113
      %s128 = sphi 0, %s114
      %s132 = sphi 0, %s132
      %s134 = sphi 0, %s132
      %s135 = sphi 0, %s134
      %s149 = sphi 0, %s135
      %s153 = sphi 0, %s153
      %s155 = sphi 0, %s153
      %s156 = sphi 0, %s155
      %s170 = sphi 0, %s156
      %s176 = sphi 0, %s178
      %s179 = sphi 0, %s176
      %s180 = sphi 0, %s179
      %s196 = sphi 0, %s180
    $region4: #{single_fn.1} parent=1 // loop_header_branch
      %22 = sbr.rel (%p20) target = $region8
    $region5: #{single_fn.1} parent=1 // loop_body
      %s24 = ssub.s32 %s19, 1
      %s25 = ssub.s32 %s19, 2
      %s26 = sadd.s32 %s19, 1
      %s28 = sadd.s32 %s27, 1
      %p31 = scmp.eq.s32.totalorder %s19, 2
      %p32 = scmp.ne.s32.totalorder %s27, %s29
      %p33 = scmp.eq.s32.totalorder %s19, 0
      %p34 = por %p32, %p33
      %p35 = scmp.ne.s32.totalorder %s27, %s29
      %p36 = scmp.eq.s32.totalorder %s24, 2
      %p37 = por %p35, %p36
      %p38 = scmp.ne.s32.totalorder %s29, %s30
      %p39 = scmp.eq.s32.totalorder %s24, 0
      %p40 = por %p38, %p39
      %p41 = scmp.ne.s32.totalorder %s29, %s30
      %p42 = scmp.eq.s32.totalorder %s25, 2
      %p43 = por %p41, %p42
      %p45 = scmp.ne.s32.totalorder %s30, %s44
      %p46 = scmp.eq.s32.totalorder %s25, 0
      %p47 = por %p45, %p46
      %s49 = sadd.s32 %s48, 1
      %p52 = scmp.eq.s32.totalorder %s19, 2
      %p53 = scmp.ne.s32.totalorder %s48, %s50
      %p54 = scmp.eq.s32.totalorder %s19, 0
      %p55 = por %p53, %p54
      %p56 = scmp.ne.s32.totalorder %s48, %s50
      %p57 = scmp.eq.s32.totalorder %s24, 2
      %p58 = por %p56, %p57
      %p59 = scmp.ne.s32.totalorder %s50, %s51
      %p60 = scmp.eq.s32.totalorder %s24, 0
      %p61 = por %p59, %p60
      %p62 = scmp.ne.s32.totalorder %s50, %s51
      %p63 = scmp.eq.s32.totalorder %s25, 2
      %p64 = por %p62, %p63
      %p66 = scmp.ne.s32.totalorder %s51, %s65
      %p67 = scmp.eq.s32.totalorder %s25, 0
      %p68 = por %p66, %p67
      %s70 = sadd.s32 %s69, 1
      %p73 = scmp.eq.s32.totalorder %s19, 2
      %p74 = scmp.ne.s32.totalorder %s69, %s71
      %p75 = scmp.eq.s32.totalorder %s19, 0
      %p76 = por %p74, %p75
      %p77 = scmp.ne.s32.totalorder %s69, %s71
      %p78 = scmp.eq.s32.totalorder %s24, 2
      %p79 = por %p77, %p78
      %p80 = scmp.ne.s32.totalorder %s71, %s72
      %p81 = scmp.eq.s32.totalorder %s24, 0
      %p82 = por %p80, %p81
      %p83 = scmp.ne.s32.totalorder %s71, %s72
      %p84 = scmp.eq.s32.totalorder %s25, 2
      %p85 = por %p83, %p84
      %p87 = scmp.ne.s32.totalorder %s72, %s86
      %p88 = scmp.eq.s32.totalorder %s25, 0
      %p89 = por %p87, %p88
      %s91 = sadd.s32 %s90, 1
      %p94 = scmp.eq.s32.totalorder %s19, 2
      %p95 = scmp.ne.s32.totalorder %s90, %s92
      %p96 = scmp.eq.s32.totalorder %s19, 0
      %p97 = por %p95, %p96
      %p98 = scmp.ne.s32.totalorder %s90, %s92
      %p99 = scmp.eq.s32.totalorder %s24, 2
      %p100 = por %p98, %p99
      %p101 = scmp.ne.s32.totalorder %s92, %s93
      %p102 = scmp.eq.s32.totalorder %s24, 0
      %p103 = por %p101, %p102
      %p104 = scmp.ne.s32.totalorder %s92, %s93
      %p105 = scmp.eq.s32.totalorder %s25, 2
      %p106 = por %p104, %p105
      %p108 = scmp.ne.s32.totalorder %s93, %s107
      %p109 = scmp.eq.s32.totalorder %s25, 0
      %p110 = por %p108, %p109
      %s112 = sadd.s32 %s111, 1
      %p115 = scmp.eq.s32.totalorder %s19, 2
      %p116 = scmp.ne.s32.totalorder %s111, %s113
      %p117 = scmp.eq.s32.totalorder %s19, 0
      %p118 = por %p116, %p117
      %p119 = scmp.ne.s32.totalorder %s111, %s113
      %p120 = scmp.eq.s32.totalorder %s24, 2
      %p121 = por %p119, %p120
      %p122 = scmp.ne.s32.totalorder %s113, %s114
      %p123 = scmp.eq.s32.totalorder %s24, 0
      %p124 = por %p122, %p123
      %p125 = scmp.ne.s32.totalorder %s113, %s114
      %p126 = scmp.eq.s32.totalorder %s25, 2
      %p127 = por %p125, %p126
      %p129 = scmp.ne.s32.totalorder %s114, %s128
      %p130 = scmp.eq.s32.totalorder %s25, 0
      %p131 = por %p129, %p130
      %s133 = sadd.s32 %s132, 1
      %p136 = scmp.eq.s32.totalorder %s19, 2
      %p137 = scmp.ne.s32.totalorder %s132, %s134
      %p138 = scmp.eq.s32.totalorder %s19, 0
      %p139 = por %p137, %p138
      %p140 = scmp.ne.s32.totalorder %s132, %s134
      %p141 = scmp.eq.s32.totalorder %s24, 2
      %p142 = por %p140, %p141
      %p143 = scmp.ne.s32.totalorder %s134, %s135
      %p144 = scmp.eq.s32.totalorder %s24, 0
      %p145 = por %p143, %p144
      %p146 = scmp.ne.s32.totalorder %s134, %s135
      %p147 = scmp.eq.s32.totalorder %s25, 2
      %p148 = por %p146, %p147
      %p150 = scmp.ne.s32.totalorder %s135, %s149
      %p151 = scmp.eq.s32.totalorder %s25, 0
      %p152 = por %p150, %p151
      %s154 = sadd.s32 %s153, 1
      %p157 = scmp.eq.s32.totalorder %s19, 2
      %p158 = scmp.ne.s32.totalorder %s153, %s155
      %p159 = scmp.eq.s32.totalorder %s19, 0
      %p160 = por %p158, %p159
      %p161 = scmp.ne.s32.totalorder %s153, %s155
      %p162 = scmp.eq.s32.totalorder %s24, 2
      %p163 = por %p161, %p162
      %p164 = scmp.ne.s32.totalorder %s155, %s156
      %p165 = scmp.eq.s32.totalorder %s24, 0
      %p166 = por %p164, %p165
      %p167 = scmp.ne.s32.totalorder %s155, %s156
      %p168 = scmp.eq.s32.totalorder %s25, 2
      %p169 = por %p167, %p168
      %p171 = scmp.ne.s32.totalorder %s156, %s170
      %p172 = scmp.eq.s32.totalorder %s25, 0
      %p173 = por %p171, %p172
      %s174 = ssub.s32 %s19, %s26
      %p175 = scmp.eq.s32.totalorder %s174, 0
      %s177 = sadd.s32 %s176, 1
      %s178 = scalar_select %p175, %s176, %s177
      %p181 = pneg %p175
      %p182 = scmp.eq.s32.totalorder %s19, 2
      %p183 = por %p181, %p182
      %p184 = scmp.ne.s32.totalorder %s176, %s179
      %p185 = scmp.eq.s32.totalorder %s19, 0
      %p186 = por %p184, %p185
      %p187 = scmp.ne.s32.totalorder %s176, %s179
      %p188 = scmp.eq.s32.totalorder %s24, 2
      %p189 = por %p187, %p188
      %p190 = scmp.ne.s32.totalorder %s179, %s180
      %p191 = scmp.eq.s32.totalorder %s24, 0
      %p192 = por %p190, %p191
      %p193 = scmp.ne.s32.totalorder %s179, %s180
      %p194 = scmp.eq.s32.totalorder %s25, 2
      %p195 = por %p193, %p194
      %p197 = scmp.ne.s32.totalorder %s180, %s196
      %p198 = scmp.eq.s32.totalorder %s25, 0
      %p199 = por %p197, %p198
      %p200 = scmp.le.s32.totalorder 1, %s19
      %p201 = scmp.lt.s32.totalorder %s19, 4
      %p202 = pnand %p200, %p201
      %p203 = pneg %p202
      // Predicated region
      $region9: #{single_fn.1} parent=5 // pred_check
        _
      $region10: #{single_fn.1} parent=5 // pred_check_branch
        %205 = sbr.rel (%p202) target = $region12
      $region11: #{single_fn.1} parent=5 // pred_region
        %s206 = ssub.s32 %s19, 1
        // Predicated region
        $region13: #{single_fn.1} parent=11 // pred_check
          %p207 = pneg %p40
        $region14: #{single_fn.1} parent=11 // pred_check_branch
          %209 = sbr.rel (%p207) target = $region16
        $region15: #{single_fn.1} parent=11 // pred_region
          %s211 = ssub.s32 64, 64
          %212 = vsyncadd [#allocation5], %s211
          %215 = dma.hbm_to_smem %s0, 64, [#allocation2], [#allocation5]
        $region16: #{single_fn.1} parent=11 // pred_fallthru
          _
        // Predicated region
        $region17: #{single_fn.1} parent=11 // pred_check
          %p216 = pneg %p61
        $region18: #{single_fn.1} parent=11 // pred_check_branch
          %218 = sbr.rel (%p216) target = $region20
        $region19: #{single_fn.1} parent=11 // pred_region
          %s220 = ssub.s32 16, 16
          %221 = vsyncadd [#allocation6], %s220
          %s223 = sshll.u32 %s1, 4
          %s224 = int_to_ptr.vmem [resolvable:$true] %s223
          %226 = dma.vmem_to_smem %s224, 16, [#allocation7], [#allocation6]
        $region20: #{single_fn.1} parent=11 // pred_fallthru
          _
        // Predicated region
        $region21: #{single_fn.1} parent=11 // pred_check
          %p227 = pneg %p82
        $region22: #{single_fn.1} parent=11 // pred_check_branch
          %229 = sbr.rel (%p227) target = $region24
        $region23: #{single_fn.1} parent=11 // pred_region
          _
        $region24: #{single_fn.1} parent=11 // pred_fallthru
          _
        // Predicated region
        $region25: #{single_fn.1} parent=11 // pred_check
          %p230 = pneg %p103
        $region26: #{single_fn.1} parent=11 // pred_check_branch
          %232 = sbr.rel (%p230) target = $region28
        $region27: #{single_fn.1} parent=11 // pred_region
          _
        $region28: #{single_fn.1} parent=11 // pred_fallthru
          _
        // Predicated region
        $region29: #{single_fn.1} parent=11 // pred_check
          %p233 = pneg %p124
        $region30: #{single_fn.1} parent=11 // pred_check_branch
          %235 = sbr.rel (%p233) target = $region32
        $region31: #{single_fn.1} parent=11 // pred_region
          %s237 = ssub.s32 128, 128
          %238 = vsyncadd [#allocation3], %s237
          %s240 = sshll.u32 [#allocation8], 4
          %s241 = int_to_ptr.vmem [resolvable:$true] %s240
          %243 = dma.hbm_to_vmem [thread:$0]  %s4, 128, %s241, [#allocation3]
        $region32: #{single_fn.1} parent=11 // pred_fallthru
          _
        // Predicated region
        $region33: #{single_fn.1} parent=11 // pred_check
          %p244 = pneg %p145
        $region34: #{single_fn.1} parent=11 // pred_check_branch
          %246 = sbr.rel (%p244) target = $region36
        $region35: #{single_fn.1} parent=11 // pred_region
          _
        $region36: #{single_fn.1} parent=11 // pred_fallthru
          _
        // Predicated region
        $region37: #{single_fn.1} parent=11 // pred_check
          %p247 = pneg %p166
        $region38: #{single_fn.1} parent=11 // pred_check_branch
          %249 = sbr.rel (%p247) target = $region40
        $region39: #{single_fn.1} parent=11 // pred_region
          _
        $region40: #{single_fn.1} parent=11 // pred_fallthru
          _
      $region12: #{single_fn.1} parent=5 // pred_fallthru
        _
      %p250 = scmp.lt.s32.totalorder %s19, 3
      // Predicated region
      $region41: #{single_fn.1} parent=5 // pred_check
        %p251 = pneg %p250
      $region42: #{single_fn.1} parent=5 // pred_check_branch
        %253 = sbr.rel (%p251) target = $region44
      $region43: #{single_fn.1} parent=5 // pred_region
        _
      $region44: #{single_fn.1} parent=5 // pred_fallthru
        _
      %p254 = scmp.le.s32.totalorder 1, %s19
      %p255 = scmp.lt.s32.totalorder %s19, 4
      %p256 = pnand %p254, %p255
      %p257 = pneg %p256
      // Predicated region
      $region45: #{single_fn.1} parent=5 // pred_check
        _
      $region46: #{single_fn.1} parent=5 // pred_check_branch
        %259 = sbr.rel (%p256) target = $region48
      $region47: #{single_fn.1} parent=5 // pred_region
        %s260 = ssub.s32 %s19, 1
        // Predicated region
        $region49: #{single_fn.1} parent=47 // pred_check
          %p261 = pneg %p40
        $region50: #{single_fn.1} parent=47 // pred_check_branch
          %263 = sbr.rel (%p261) target = $region52
        $region51: #{single_fn.1} parent=47 // pred_region
          %264 = dma.done [#allocation5], 64
        $region52: #{single_fn.1} parent=47 // pred_fallthru
          _
        // Predicated region
        $region53: #{single_fn.1} parent=47 // pred_check
          %p265 = pneg %p61
        $region54: #{single_fn.1} parent=47 // pred_check_branch
          %267 = sbr.rel (%p265) target = $region56
        $region55: #{single_fn.1} parent=47 // pred_region
          %268 = dma.done [#allocation6], 16
        $region56: #{single_fn.1} parent=47 // pred_fallthru
          _
        // Predicated region
        $region57: #{single_fn.1} parent=47 // pred_check
          %p269 = pneg %p124
        $region58: #{single_fn.1} parent=47 // pred_check_branch
          %271 = sbr.rel (%p269) target = $region60
        $region59: #{single_fn.1} parent=47 // pred_region
          %272 = dma.done [#allocation3], 128
        $region60: #{single_fn.1} parent=47 // pred_fallthru
          _
        %273 = sfence
        %p274 = pneg %p40
        %p275 = pneg %p37
        %p276 = pneg %p61
        %p277 = pneg %p58
        %p278 = pneg %p82
        %p279 = pneg %p79
        %p280 = pneg %p103
        %p281 = pneg %p100
        %p282 = pneg %p124
        %p283 = pneg %p121
        %p284 = pneg %p145
        %p285 = pneg %p142
        %p286 = pneg %p166
        %p287 = pneg %p163
        %p288 = pneg %p192
        %p289 = pneg %p189
        %s290 = sand.u32 %s179, 1
        %s291 = scalar_lea.sflag [#allocation4], %s290
        %s292 = sand.u32 %s179, 1
        %s293 = smul.addr %s292, 64
        %s294 = scalar_lea.vmem [#allocation9], %s293
        %v296 = vld [vmem:[%s2] sm:$0xff]
        %s297 = sld [smem:[#allocation2 + %s24]]
        %v298 = vstv %s297
        %v299 = vmul.f32 %v296, %v298
        %s300 = scalar_lea.vmem %s2, 8
        %v301 = vld [vmem:[%s300] sm:$0xff]
        %s302 = sshra.s32 %s24, 7
        %s303 = sand.u32 %s24, 127
        %s304 = sadd.s32 %s302, 1
        %s305 = smul.u32 %s304, 128
        %s306 = sshra.s32 %s24, 7
        %s307 = sand.u32 %s24, 127
        %s308 = sadd.s32 %s305, %s307
        %s309 = sld [smem:[#allocation2 + %s308]]
        %v310 = vstv %s309
        %v311 = vmul.f32 %v301, %v310
        %v312 = vadd.f32 %v299, %v311
        %s313 = scalar_lea.vmem %s2, 16
        %v314 = vld [vmem:[%s313] sm:$0xff]
        %s315 = sadd.s32 %s302, 2
        %s316 = smul.u32 %s315, 128
        %s317 = sadd.s32 %s316, %s307
        %s318 = sld [smem:[#allocation2 + %s317]]
        %v319 = vstv %s318
        %v320 = vmul.f32 %v314, %v319
        %v321 = vadd.f32 %v312, %v320
        %s322 = scalar_lea.vmem %s2, 24
        %v323 = vld [vmem:[%s322] sm:$0xff]
        %s324 = sadd.s32 %s302, 3
        %s325 = smul.u32 %s324, 128
        %s326 = sadd.s32 %s325, %s307
        %s327 = sld [smem:[#allocation2 + %s326]]
        %v328 = vstv %s327
        %v329 = vmul.f32 %v323, %v328
        %v330 = vadd.f32 %v321, %v329
        %v331 = vld [vmem:[%s3] sm:$0xff]
        %v332 = vld [vmem:[%s3 + $0x8] sm:$0xff]
        %v333 = vld [vmem:[%s3 + $0x10] sm:$0xff]
        %v334 = vld [vmem:[%s3 + $0x18] sm:$0xff]
        %v335 = vld [vmem:[%s3 + $0x20] sm:$0xff]
        %v336 = vld [vmem:[%s3 + $0x28] sm:$0xff]
        %v337 = vld [vmem:[%s3 + $0x30] sm:$0xff]
        %v338 = vld [vmem:[%s3 + $0x38] sm:$0xff]
        %vm339 = vcmask 64512
        %v341 = vsel %vm339, %v331, 0
        %v344 = vsel %vm339, %v332, 0
        %v347 = vsel %vm339, %v333, 0
        %v350 = vsel %vm339, %v334, 0
        %v353 = vsel %vm339, %v335, 0
        %v356 = vsel %vm339, %v336, 0
        %v359 = vsel %vm339, %v337, 0
        %v362 = vsel %vm339, %v338, 0
        %364 = vmatprep.subr.mxu0 0.0
        %365 = vmatpush1.msra.mxu0 %v330
        %366 = vmatprep.subr.mxu0 0.0
        %367 = vmatpush1.msra.mxu0 0.0
        %368 = vmatprep.subr.mxu0 0.0
        %369 = vmatpush1.msra.mxu0 0.0
        %370 = vmatprep.subr.mxu0 0.0
        %371 = vmatpush1.msra.mxu0 0.0
        %372 = vmatprep.subr.mxu0 0.0
        %373 = vmatpush1.msra.mxu0 0.0
        %374 = vmatprep.subr.mxu0 0.0
        %375 = vmatpush1.msra.mxu0 0.0
        %376 = vmatprep.subr.mxu0 0.0
        %377 = vmatpush1.msra.mxu0 0.0
        %378 = vmatprep.subr.mxu0 0.0
        %379 = vmatpush1.msra.mxu0 0.0
        %380 = vmatprep.subr.mxu0 0.0
        %381 = vmatpush1.msra.mxu0 0.0
        %382 = vmatprep.subr.mxu0 0.0
        %383 = vmatpush1.msra.mxu0 0.0
        %384 = vmatprep.subr.mxu0 0.0
        %385 = vmatpush1.msra.mxu0 0.0
        %386 = vmatprep.subr.mxu0 0.0
        %387 = vmatpush1.msra.mxu0 0.0
        %388 = vmatprep.subr.mxu0 0.0
        %389 = vmatpush1.msra.mxu0 0.0
        %390 = vmatprep.subr.mxu0 0.0
        %391 = vmatpush1.msra.mxu0 0.0
        %392 = vmatprep.subr.mxu0 0.0
        %393 = vmatpush1.msra.mxu0 0.0
        %394 = vmatprep.subr.mxu0 0.0
        %395 = vmatpush1.msra.mxu0 0.0
        %396 = vmatprep.subr.mxu0 0.0
        %397 = vmatpush1.msra.mxu0 0.0
        %398 = vmatprep.subr.mxu0 0.0
        %399 = vmatpush1.msra.mxu0 0.0
        %400 = vmatprep.subr.mxu0 0.0
        %401 = vmatpush1.msra.mxu0 0.0
        %402 = vmatprep.subr.mxu0 0.0
        %403 = vmatpush1.msra.mxu0 0.0
        %404 = vmatprep.subr.mxu0 0.0
        %405 = vmatpush1.msra.mxu0 0.0
        %406 = vmatprep.subr.mxu0 0.0
        %407 = vmatpush1.msra.mxu0 0.0
        %408 = vmatprep.subr.mxu0 0.0
        %409 = vmatpush1.msra.mxu0 0.0
        %410 = vmatprep.subr.mxu0 0.0
        %411 = vmatpush1.msra.mxu0 0.0
        %412 = vmatprep.subr.mxu0 0.0
        %413 = vmatpush1.msra.mxu0 0.0
        %414 = vmatprep.subr.mxu0 0.0
        %415 = vmatpush1.msra.mxu0 0.0
        %416 = vmatprep.subr.mxu0 0.0
        %417 = vmatpush1.msra.mxu0 0.0
        %418 = vmatprep.subr.mxu0 0.0
        %419 = vmatpush1.msra.mxu0 0.0
        %420 = vmatprep.subr.mxu0 0.0
        %421 = vmatpush1.msra.mxu0 0.0
        %422 = vmatprep.subr.mxu0 0.0
        %423 = vmatpush1.msra.mxu0 0.0
        %424 = vmatprep.subr.mxu0 0.0
        %425 = vmatpush1.msra.mxu0 0.0
        %426 = vmatprep.subr.mxu0 0.0
        %427 = vmatpush1.msra.mxu0 0.0
        %428 = vmatprep.mubr.f32.mxu0 0.0
        %429 = vmatmul.mubr.f32.gmra.mrb[0].mxu0 %v341
        %v430 = vpop.f32.mrb[0].mxu0
        %v431 = vadd.f32 0.0, %v430
        %v432 = vpop.f32.mrb[0].mxu0
        %433 = vmatprep.mubr.f32.mxu0 0.0
        %434 = vmatmul.mubr.f32.gmra.mrb[0].mxu0 %v344
        %v435 = vpop.f32.mrb[0].mxu0
        %v436 = vadd.f32 0.0, %v435
        %v437 = vpop.f32.mrb[0].mxu0
        %438 = vmatprep.mubr.f32.mxu0 0.0
        %439 = vmatmul.mubr.f32.gmra.mrb[0].mxu0 %v347
        %v440 = vpop.f32.mrb[0].mxu0
        %v441 = vadd.f32 0.0, %v440
        %v442 = vpop.f32.mrb[0].mxu0
        %443 = vmatprep.mubr.f32.mxu0 0.0
        %444 = vmatmul.mubr.f32.gmra.mrb[0].mxu0 %v350
        %v445 = vpop.f32.mrb[0].mxu0
        %v446 = vadd.f32 0.0, %v445
        %v447 = vpop.f32.mrb[0].mxu0
        %448 = vmatprep.mubr.f32.mxu0 0.0
        %449 = vmatmul.mubr.f32.gmra.mrb[0].mxu0 %v353
        %v450 = vpop.f32.mrb[0].mxu0
        %v451 = vadd.f32 0.0, %v450
        %v452 = vpop.f32.mrb[0].mxu0
        %453 = vmatprep.mubr.f32.mxu0 0.0
        %454 = vmatmul.mubr.f32.gmra.mrb[0].mxu0 %v356
        %v455 = vpop.f32.mrb[0].mxu0
        %v456 = vadd.f32 0.0, %v455
        %v457 = vpop.f32.mrb[0].mxu0
        %458 = vmatprep.mubr.f32.mxu0 0.0
        %459 = vmatmul.mubr.f32.gmra.mrb[0].mxu0 %v359
        %v460 = vpop.f32.mrb[0].mxu0
        %v461 = vadd.f32 0.0, %v460
        %v462 = vpop.f32.mrb[0].mxu0
        %463 = vmatprep.mubr.f32.mxu0 0.0
        %464 = vmatmul.mubr.f32.gmra.mrb[0].mxu0 %v362
        %v465 = vpop.f32.mrb[0].mxu0
        %v466 = vadd.f32 0.0, %v465
        %v467 = vpop.f32.mrb[0].mxu0
        %468 = vdwg.mxu0
        %v469 = vld [vmem:[#allocation8] sm:$0xff]
        %s470 = sld [smem:[#allocation7 + %s24]]
        %v471 = vstv %s470
        %v473 = vsel %vm339, %v431, 0
        %v476 = vsel %vm339, %v436, 0
        %v479 = vsel %vm339, %v441, 0
        %v482 = vsel %vm339, %v446, 0
        %v485 = vsel %vm339, %v451, 0
        %v488 = vsel %vm339, %v456, 0
        %v491 = vsel %vm339, %v461, 0
        %v494 = vsel %vm339, %v466, 0
        %496 = vmatprep.subr.mxu0 0.0
        %497 = vmatpush1.msra.mxu0 %v469
        %498 = vmatprep.subr.mxu0 0.0
        %499 = vmatpush1.msra.mxu0 0.0
        %500 = vmatprep.subr.mxu0 0.0
        %501 = vmatpush1.msra.mxu0 0.0
        %502 = vmatprep.subr.mxu0 0.0
        %503 = vmatpush1.msra.mxu0 0.0
        %504 = vmatprep.subr.mxu0 0.0
        %505 = vmatpush1.msra.mxu0 0.0
        %506 = vmatprep.subr.mxu0 0.0
        %507 = vmatpush1.msra.mxu0 0.0
        %508 = vmatprep.subr.mxu0 0.0
        %509 = vmatpush1.msra.mxu0 0.0
        %510 = vmatprep.subr.mxu0 0.0
        %511 = vmatpush1.msra.mxu0 0.0
        %512 = vmatprep.subr.mxu0 0.0
        %513 = vmatpush1.msra.mxu0 0.0
        %514 = vmatprep.subr.mxu0 0.0
        %515 = vmatpush1.msra.mxu0 0.0
        %516 = vmatprep.subr.mxu0 0.0
        %517 = vmatpush1.msra.mxu0 0.0
        %518 = vmatprep.subr.mxu0 0.0
        %519 = vmatpush1.msra.mxu0 0.0
        %520 = vmatprep.subr.mxu0 0.0
        %521 = vmatpush1.msra.mxu0 0.0
        %522 = vmatprep.subr.mxu0 0.0
        %523 = vmatpush1.msra.mxu0 0.0
        %524 = vmatprep.subr.mxu0 0.0
        %525 = vmatpush1.msra.mxu0 0.0
        %526 = vmatprep.subr.mxu0 0.0
        %527 = vmatpush1.msra.mxu0 0.0
        %528 = vmatprep.subr.mxu0 0.0
        %529 = vmatpush1.msra.mxu0 0.0
        %530 = vmatprep.subr.mxu0 0.0
        %531 = vmatpush1.msra.mxu0 0.0
        %532 = vmatprep.subr.mxu0 0.0
        %533 = vmatpush1.msra.mxu0 0.0
        %534 = vmatprep.subr.mxu0 0.0
        %535 = vmatpush1.msra.mxu0 0.0
        %536 = vmatprep.subr.mxu0 0.0
        %537 = vmatpush1.msra.mxu0 0.0
        %538 = vmatprep.subr.mxu0 0.0
        %539 = vmatpush1.msra.mxu0 0.0
        %540 = vmatprep.subr.mxu0 0.0
        %541 = vmatpush1.msra.mxu0 0.0
        %542 = vmatprep.subr.mxu0 0.0
        %543 = vmatpush1.msra.mxu0 0.0
        %544 = vmatprep.subr.mxu0 0.0
        %545 = vmatpush1.msra.mxu0 0.0
        %546 = vmatprep.subr.mxu0 0.0
        %547 = vmatpush1.msra.mxu0 0.0
        %548 = vmatprep.subr.mxu0 0.0
        %549 = vmatpush1.msra.mxu0 0.0
        %550 = vmatprep.subr.mxu0 0.0
        %551 = vmatpush1.msra.mxu0 0.0
        %552 = vmatprep.subr.mxu0 0.0
        %553 = vmatpush1.msra.mxu0 0.0
        %554 = vmatprep.subr.mxu0 0.0
        %555 = vmatpush1.msra.mxu0 0.0
        %556 = vmatprep.subr.mxu0 0.0
        %557 = vmatpush1.msra.mxu0 0.0
        %558 = vmatprep.subr.mxu0 0.0
        %559 = vmatpush1.msra.mxu0 0.0
        %560 = vmatprep.mubr.f32.mxu0 0.0
        %561 = vmatmul.mubr.f32.gmra.mrb[0].mxu0 %v473
        %v562 = vpop.f32.mrb[0].mxu0
        %v563 = vadd.f32 %v471, %v562
        %v564 = vpop.f32.mrb[0].mxu0
        %565 = vmatprep.mubr.f32.mxu0 0.0
        %566 = vmatmul.mubr.f32.gmra.mrb[0].mxu0 %v476
        %v567 = vpop.f32.mrb[0].mxu0
        %v568 = vadd.f32 %v471, %v567
        %v569 = vpop.f32.mrb[0].mxu0
        %570 = vmatprep.mubr.f32.mxu0 0.0
        %571 = vmatmul.mubr.f32.gmra.mrb[0].mxu0 %v479
        %v572 = vpop.f32.mrb[0].mxu0
        %v573 = vadd.f32 %v471, %v572
        %v574 = vpop.f32.mrb[0].mxu0
        %575 = vmatprep.mubr.f32.mxu0 0.0
        %576 = vmatmul.mubr.f32.gmra.mrb[0].mxu0 %v482
        %v577 = vpop.f32.mrb[0].mxu0
        %v578 = vadd.f32 %v471, %v577
        %v579 = vpop.f32.mrb[0].mxu0
        %580 = vmatprep.mubr.f32.mxu0 0.0
        %581 = vmatmul.mubr.f32.gmra.mrb[0].mxu0 %v485
        %v582 = vpop.f32.mrb[0].mxu0
        %v583 = vadd.f32 %v471, %v582
        %v584 = vpop.f32.mrb[0].mxu0
        %585 = vmatprep.mubr.f32.mxu0 0.0
        %586 = vmatmul.mubr.f32.gmra.mrb[0].mxu0 %v488
        %v587 = vpop.f32.mrb[0].mxu0
        %v588 = vadd.f32 %v471, %v587
        %v589 = vpop.f32.mrb[0].mxu0
        %590 = vmatprep.mubr.f32.mxu0 0.0
        %591 = vmatmul.mubr.f32.gmra.mrb[0].mxu0 %v491
        %v592 = vpop.f32.mrb[0].mxu0
        %v593 = vadd.f32 %v471, %v592
        %v594 = vpop.f32.mrb[0].mxu0
        %595 = vmatprep.mubr.f32.mxu0 0.0
        %596 = vmatmul.mubr.f32.gmra.mrb[0].mxu0 %v494
        %v597 = vpop.f32.mrb[0].mxu0
        %v598 = vadd.f32 %v471, %v597
        %v599 = vpop.f32.mrb[0].mxu0
        %600 = vdwg.mxu0
        %v601 = vmax.f32 %v563, 0.0
        %v602 = vmax.f32 %v568, 0.0
        %v603 = vmax.f32 %v573, 0.0
        %v604 = vmax.f32 %v578, 0.0
        %v605 = vmax.f32 %v583, 0.0
        %v606 = vmax.f32 %v588, 0.0
        %v607 = vmax.f32 %v593, 0.0
        %v608 = vmax.f32 %v598, 0.0
        %v609 = vmin.f32 %v601, 1.0
        %v610 = vmin.f32 %v602, 1.0
        %v611 = vmin.f32 %v603, 1.0
        %v612 = vmin.f32 %v604, 1.0
        %v613 = vmin.f32 %v605, 1.0
        %v614 = vmin.f32 %v606, 1.0
        %v615 = vmin.f32 %v607, 1.0
        %v616 = vmin.f32 %v608, 1.0
        %v617 = vpack.c.bf16 %v610, %v609
        %v618 = vpack.c.bf16 %v612, %v611
        %v619 = vpack.c.bf16 %v614, %v613
        %v620 = vpack.c.bf16 %v616, %v615
        %v621 = vld [vmem:[%s5] sm:$0xf]
        %v622 = vld [vmem:[%s5 + $0x4] sm:$0xf]
        %v623 = vld [vmem:[%s5 + $0x8] sm:$0xf]
        %v624 = vld [vmem:[%s5 + $0xc] sm:$0xf]
        %v625 = vld [vmem:[%s5 + $0x10] sm:$0xf]
        %v626 = vld [vmem:[%s5 + $0x14] sm:$0xf]
        %v627 = vld [vmem:[%s5 + $0x18] sm:$0xf]
        %v628 = vld [vmem:[%s5 + $0x1c] sm:$0xf]
        %v637 = vunpack.c.l.b16 %v621
        %v638 = vunpack.c.l.b16 %v622
        %v639 = vunpack.c.l.b16 %v623
        %v640 = vunpack.c.l.b16 %v624
        %v641 = vunpack.c.l.b16 %v625
        %v642 = vunpack.c.l.b16 %v626
        %v643 = vunpack.c.l.b16 %v627
        %v644 = vunpack.c.l.b16 %v628
        %v645 = vpack.c.b16 %v638, %v637
        %v646 = vpack.c.b16 %v640, %v639
        %v647 = vpack.c.b16 %v642, %v641
        %v648 = vpack.c.b16 %v644, %v643
        %vm649 = vcmask 523264
        %v651 = vsel %vm649, %v645, 0
        %v654 = vsel %vm649, %v646, 0
        %v657 = vsel %vm649, %v647, 0
        %v660 = vsel %vm649, %v648, 0
        %662 = vmatprep.subr.bf16.mxu0 0
        %663 = vmatpush1.bf16.msra.mxu0 %v617
        %664 = vmatprep.subr.bf16.mxu0 0
        %665 = vmatpush1.bf16.msra.mxu0 %v618
        %666 = vmatprep.subr.bf16.mxu0 0
        %667 = vmatpush1.bf16.msra.mxu0 %v619
        %668 = vmatprep.subr.bf16.mxu0 0
        %669 = vmatpush1.bf16.msra.mxu0 %v620
        %670 = vmatprep.subr.bf16.mxu0 0
        %671 = vmatpush1.bf16.msra.mxu0 0
        %672 = vmatprep.subr.bf16.mxu0 0
        %673 = vmatpush1.bf16.msra.mxu0 0
        %674 = vmatprep.subr.bf16.mxu0 0
        %675 = vmatpush1.bf16.msra.mxu0 0
        %676 = vmatprep.subr.bf16.mxu0 0
        %677 = vmatpush1.bf16.msra.mxu0 0
        %678 = vmatprep.subr.bf16.mxu0 0
        %679 = vmatpush1.bf16.msra.mxu0 0
        %680 = vmatprep.subr.bf16.mxu0 0
        %681 = vmatpush1.bf16.msra.mxu0 0
        %682 = vmatprep.subr.bf16.mxu0 0
        %683 = vmatpush1.bf16.msra.mxu0 0
        %684 = vmatprep.subr.bf16.mxu0 0
        %685 = vmatpush1.bf16.msra.mxu0 0
        %686 = vmatprep.subr.bf16.mxu0 0
        %687 = vmatpush1.bf16.msra.mxu0 0
        %688 = vmatprep.subr.bf16.mxu0 0
        %689 = vmatpush1.bf16.msra.mxu0 0
        %690 = vmatprep.subr.bf16.mxu0 0
        %691 = vmatpush1.bf16.msra.mxu0 0
        %692 = vmatprep.subr.bf16.mxu0 0
        %693 = vmatpush1.bf16.msra.mxu0 0
        %694 = vmatprep.mubr.bf16.mxu0 0
        %695 = vmatmul.mubr.bf16.gmra.mrb[0].mxu0 %v651
        %v696 = vpop.f32.mrb[0].mxu0
        %v697 = vadd.f32 0.0, %v696
        %v698 = vpop.f32.mrb[0].mxu0
        %v699 = vpop.f32.mrb[0].mxu0
        %v700 = vadd.f32 0.0, %v699
        %v701 = vpop.f32.mrb[0].mxu0
        %702 = vmatprep.mubr.bf16.mxu0 0
        %703 = vmatmul.mubr.bf16.gmra.mrb[0].mxu0 %v654
        %v704 = vpop.f32.mrb[0].mxu0
        %v705 = vadd.f32 0.0, %v704
        %v706 = vpop.f32.mrb[0].mxu0
        %v707 = vpop.f32.mrb[0].mxu0
        %v708 = vadd.f32 0.0, %v707
        %v709 = vpop.f32.mrb[0].mxu0
        %710 = vmatprep.mubr.bf16.mxu0 0
        %711 = vmatmul.mubr.bf16.gmra.mrb[0].mxu0 %v657
        %v712 = vpop.f32.mrb[0].mxu0
        %v713 = vadd.f32 0.0, %v712
        %v714 = vpop.f32.mrb[0].mxu0
        %v715 = vpop.f32.mrb[0].mxu0
        %v716 = vadd.f32 0.0, %v715
        %v717 = vpop.f32.mrb[0].mxu0
        %718 = vmatprep.mubr.bf16.mxu0 0
        %719 = vmatmul.mubr.bf16.gmra.mrb[0].mxu0 %v660
        %v720 = vpop.f32.mrb[0].mxu0
        %v721 = vadd.f32 0.0, %v720
        %v722 = vpop.f32.mrb[0].mxu0
        %v723 = vpop.f32.mrb[0].mxu0
        %v724 = vadd.f32 0.0, %v723
        %v725 = vpop.f32.mrb[0].mxu0
        %726 = vdwg.mxu0
        %v727 = vpack.c.bf16 %v700, %v697
        %v728 = vpack.c.bf16 %v708, %v705
        %v729 = vpack.c.bf16 %v716, %v713
        %v730 = vpack.c.bf16 %v724, %v721
        %v731 = vld [vmem:[%s6] sm:$0xf]
        %v732 = vld [vmem:[%s6 + $0x4] sm:$0xf]
        %v733 = vld [vmem:[%s6 + $0x8] sm:$0xf]
        %v734 = vld [vmem:[%s6 + $0xc] sm:$0xf]
        %v735 = vld [vmem:[%s6 + $0x10] sm:$0xf]
        %v736 = vld [vmem:[%s6 + $0x14] sm:$0xf]
        %v737 = vld [vmem:[%s6 + $0x18] sm:$0xf]
        %v738 = vld [vmem:[%s6 + $0x1c] sm:$0xf]
        %v747 = vunpack.c.l.b16 %v731
        %v748 = vunpack.c.l.b16 %v732
        %v749 = vunpack.c.l.b16 %v733
        %v750 = vunpack.c.l.b16 %v734
        %v751 = vunpack.c.l.b16 %v735
        %v752 = vunpack.c.l.b16 %v736
        %v753 = vunpack.c.l.b16 %v737
        %v754 = vunpack.c.l.b16 %v738
        %v755 = vpack.c.b16 %v748, %v747
        %v756 = vpack.c.b16 %v750, %v749
        %v757 = vpack.c.b16 %v752, %v751
        %v758 = vpack.c.b16 %v754, %v753
        %v764 = vsel %vm649, %v727, 0
        %v767 = vsel %vm649, %v728, 0
        %v770 = vsel %vm649, %v729, 0
        %v773 = vsel %vm649, %v730, 0
        %775 = vmatprep.subr.bf16.mxu0 0
        %776 = vmatpush1.bf16.msra.mxu0 %v755
        %777 = vmatprep.subr.bf16.mxu0 0
        %778 = vmatpush1.bf16.msra.mxu0 %v756
        %779 = vmatprep.subr.bf16.mxu0 0
        %780 = vmatpush1.bf16.msra.mxu0 %v757
        %781 = vmatprep.subr.bf16.mxu0 0
        %782 = vmatpush1.bf16.msra.mxu0 %v758
        %783 = vmatprep.subr.bf16.mxu0 0
        %784 = vmatpush1.bf16.msra.mxu0 0
        %785 = vmatprep.subr.bf16.mxu0 0
        %786 = vmatpush1.bf16.msra.mxu0 0
        %787 = vmatprep.subr.bf16.mxu0 0
        %788 = vmatpush1.bf16.msra.mxu0 0
        %789 = vmatprep.subr.bf16.mxu0 0
        %790 = vmatpush1.bf16.msra.mxu0 0
        %791 = vmatprep.subr.bf16.mxu0 0
        %792 = vmatpush1.bf16.msra.mxu0 0
        %793 = vmatprep.subr.bf16.mxu0 0
        %794 = vmatpush1.bf16.msra.mxu0 0
        %795 = vmatprep.subr.bf16.mxu0 0
        %796 = vmatpush1.bf16.msra.mxu0 0
        %797 = vmatprep.subr.bf16.mxu0 0
        %798 = vmatpush1.bf16.msra.mxu0 0
        %799 = vmatprep.subr.bf16.mxu0 0
        %800 = vmatpush1.bf16.msra.mxu0 0
        %801 = vmatprep.subr.bf16.mxu0 0
        %802 = vmatpush1.bf16.msra.mxu0 0
        %803 = vmatprep.subr.bf16.mxu0 0
        %804 = vmatpush1.bf16.msra.mxu0 0
        %805 = vmatprep.subr.bf16.mxu0 0
        %806 = vmatpush1.bf16.msra.mxu0 0
        %807 = vmatprep.mubr.bf16.mxu0 0
        %808 = vmatmul.mubr.bf16.gmra.mrb[0].mxu0 %v764
        %v809 = vpop.f32.mrb[0].mxu0
        %v810 = vadd.f32 0.0, %v809
        %v811 = vpop.f32.mrb[0].mxu0
        %v812 = vpop.f32.mrb[0].mxu0
        %v813 = vadd.f32 0.0, %v812
        %v814 = vpop.f32.mrb[0].mxu0
        %815 = vmatprep.mubr.bf16.mxu0 0
        %816 = vmatmul.mubr.bf16.gmra.mrb[0].mxu0 %v767
        %v817 = vpop.f32.mrb[0].mxu0
        %v818 = vadd.f32 0.0, %v817
        %v819 = vpop.f32.mrb[0].mxu0
        %v820 = vpop.f32.mrb[0].mxu0
        %v821 = vadd.f32 0.0, %v820
        %v822 = vpop.f32.mrb[0].mxu0
        %823 = vmatprep.mubr.bf16.mxu0 0
        %824 = vmatmul.mubr.bf16.gmra.mrb[0].mxu0 %v770
        %v825 = vpop.f32.mrb[0].mxu0
        %v826 = vadd.f32 0.0, %v825
        %v827 = vpop.f32.mrb[0].mxu0
        %v828 = vpop.f32.mrb[0].mxu0
        %v829 = vadd.f32 0.0, %v828
        %v830 = vpop.f32.mrb[0].mxu0
        %831 = vmatprep.mubr.bf16.mxu0 0
        %832 = vmatmul.mubr.bf16.gmra.mrb[0].mxu0 %v773
        %v833 = vpop.f32.mrb[0].mxu0
        %v834 = vadd.f32 0.0, %v833
        %v835 = vpop.f32.mrb[0].mxu0
        %v836 = vpop.f32.mrb[0].mxu0
        %v837 = vadd.f32 0.0, %v836
        %v838 = vpop.f32.mrb[0].mxu0
        %839 = vdwg.mxu0
        %840 = vst.msk [vmem:[%s294] sm:$0xff] %vm649, %v810
        %841 = vst.msk [vmem:[%s294 + $0x8] sm:$0xff] %vm649, %v813
        %842 = vst.msk [vmem:[%s294 + $0x10] sm:$0xff] %vm649, %v818
        %843 = vst.msk [vmem:[%s294 + $0x18] sm:$0xff] %vm649, %v821
        %844 = vst.msk [vmem:[%s294 + $0x20] sm:$0xff] %vm649, %v826
        %845 = vst.msk [vmem:[%s294 + $0x28] sm:$0xff] %vm649, %v829
        %846 = vst.msk [vmem:[%s294 + $0x30] sm:$0xff] %vm649, %v834
        %847 = vst.msk [vmem:[%s294 + $0x38] sm:$0xff] %vm649, %v837
        %s848 = sand.u32 %s179, 1
        %s849 = scalar_lea.sflag [#allocation4], %s848
        %s850 = sand.u32 %s179, 1
        %s851 = smul.addr %s850, 64
        %s852 = scalar_lea.vmem [#allocation9], %s851
        // Predicated region
        $region61: #{single_fn.1} parent=47 // pred_check
          %p853 = pneg %p189
        $region62: #{single_fn.1} parent=47 // pred_check_branch
          %855 = sbr.rel (%p853) target = $region64
        $region63: #{single_fn.1} parent=47 // pred_region
          %s857 = ssub.s32 1024, 1024
          %858 = vsyncadd %s849, %s857
          %s859 = smul.addr %s24, 8
          %s860 = smul.addr %s859, 128
          %s861 = scalar_lea.hbm %s7, %s860
          %s862 = sshll.u32 %s852, 4
          %s863 = int_to_ptr.vmem [resolvable:$true] %s862
          %868 = dma.vmem_to_hbm [thread:$0]  %s863, 1024, %s861, %s849, 128, 128, 8
        $region64: #{single_fn.1} parent=47 // pred_fallthru
          _
      $region48: #{single_fn.1} parent=5 // pred_fallthru
        _
      %p869 = scmp.le.s32.totalorder 2, %s19
      // Predicated region
      $region65: #{single_fn.1} parent=5 // pred_check
        %p870 = pneg %p869
      $region66: #{single_fn.1} parent=5 // pred_check_branch
        %872 = sbr.rel (%p870) target = $region68
      $region67: #{single_fn.1} parent=5 // pred_region
        %s873 = ssub.s32 %s19, 2
        // Predicated region
        $region69: #{single_fn.1} parent=67 // pred_check
          %p874 = pneg %p195
        $region70: #{single_fn.1} parent=67 // pred_check_branch
          %876 = sbr.rel (%p874) target = $region72
        $region71: #{single_fn.1} parent=67 // pred_region
          %s877 = sand.u32 %s180, 1
          %s878 = scalar_lea.sflag [#allocation4], %s877
          %s879 = sand.u32 %s180, 1
          %s880 = smul.addr %s879, 64
          %s881 = scalar_lea.vmem [#allocation9], %s880
          %882 = dma.done %s878, 1024
        $region72: #{single_fn.1} parent=67 // pred_fallthru
          _
      $region68: #{single_fn.1} parent=5 // pred_fallthru
        _
    $region6: #{single_fn.1} parent=1 // loop_footer
      %s23 = sadd.s32 1, %s19
    $region7: #{single_fn.1} parent=1 // loop_footer_branch
      %18 = sbr.rel target = $region3
    $region8: #{single_fn.1} parent=1 // loop_exit
      _
    %883 = vsyncpa [#allocation3], 1
    %s884 = scalar_lea.sflag [#allocation3], 1
    %885 = vsyncpa %s884, 1
    %886 = vsyncpa [#allocation4], 1
    %s887 = scalar_lea.sflag [#allocation4], 1
    %888 = vsyncpa %s887, 1
    %889 = vsyncpa [#allocation5], 1
    %s890 = scalar_lea.sflag [#allocation5], 1
    %891 = vsyncpa %s890, 1
    %892 = vsyncpa [#allocation6], 1
    %s893 = scalar_lea.sflag [#allocation6], 1
    %894 = vsyncpa %s893, 1

</llo_original>
